<compile_context>
chip_gen: v7x
topology: tpu7x:2x2x1
jax: 0.10.0
libtpu: 0.0.40
codegen_flags: <defaults>
</compile_context>

<pallas_src>
import math

import jax
import jax.numpy as jnp
from jax.experimental import pallas as pl
from jax.experimental.pallas import tpu as pltpu

_LANE = 512            # lane-dense minor dim (multiple of 128)
_MAX_BLOCK_ROWS = 512  # 512 x 512 f32 = 1 MiB per block buffer


def _make_repu_kernel(slope, power):
    slope = float(slope)
    power = float(power)
    is_small_int_power = power.is_integer() and 1.0 <= power <= 16.0

    def kernel(x_ref, o_ref):
        x = x_ref[...]
        y = jnp.maximum(x, 0)                       # relu, VPU
        if slope != 1.0:
            y = y * jnp.asarray(slope, dtype=y.dtype)
        if is_small_int_power:
            n = int(power)
            out = y
            for _ in range(n - 1):                  # power=2 -> one extra vmul
                out = out * y
        else:
            # Non-integer exponent: guard y==0 so the exp(p*log(y)) lowering
            # does not produce NaN at zero.
            out = jnp.where(
                y > 0,
                jnp.power(y, jnp.asarray(power, dtype=y.dtype)),
                jnp.zeros_like(y),
            )
        o_ref[...] = out.astype(o_ref.dtype)

    return kernel


def repu(x, slope=1.0, power=2.0):
    """Elementwise RePU: (slope * relu(x)) ** power. Any input shape."""
    orig_shape = x.shape
    total = int(math.prod(orig_shape)) if orig_shape else 1

    # Lane-dense repack: flatten -> (rows, _LANE), zero-padded as needed.
    rows = pl.cdiv(total, _LANE)
    if rows >= _MAX_BLOCK_ROWS:
        block_rows = _MAX_BLOCK_ROWS
        rows_padded = pl.cdiv(rows, block_rows) * block_rows
    else:
        # Single block covering the full (small) slab; block == full dims, so
        # no (8,128) divisibility requirement on the sublane dim.
        block_rows = rows
        rows_padded = rows
    num_blocks = rows_padded // block_rows

    padded_total = rows_padded * _LANE
    x_flat = x.reshape(-1)
    if padded_total != total:
        x_flat = jnp.pad(x_flat, (0, padded_total - total))
    x2d = x_flat.reshape(rows_padded, _LANE)

    kernel = _make_repu_kernel(slope, power)

    out2d = pl.pallas_call(
        kernel,
        out_shape=jax.ShapeDtypeStruct((rows_padded, _LANE), x.dtype),
        grid_spec=pl.GridSpec(
            grid=(num_blocks,),
            in_specs=[pl.BlockSpec((block_rows, _LANE), lambda i: (i, 0))],
            out_specs=pl.BlockSpec((block_rows, _LANE), lambda i: (i, 0)),
        ),
        compiler_params=pltpu.CompilerParams(
            dimension_semantics=("parallel",),
        ),
    )(x2d)

    out_flat = out2d.reshape(-1)
    if padded_total != total:
        out_flat = out_flat[:total]
    return out_flat.reshape(orig_shape)


if __name__ == "__main__":
    key = jax.random.PRNGKey(0)
    # NCHW input, same convention as the PyTorch module.
    x = jax.random.normal(key, (2, 4, 16, 16), dtype=jnp.float32)

    # Default parameters (slope=1.0, power=2.0).
    out = repu(x)
    jax.block_until_ready(out)
    ref = jnp.power(jnp.maximum(1.0 * x, 0.0), 2.0)
    assert out.shape == x.shape
    assert jnp.allclose(out, ref, atol=1e-5, rtol=1e-5)

    # Non-default parameters are honored too.
    out2 = repu(x, slope=1.5, power=3.0)
    jax.block_until_ready(out2)
    ref2 = jnp.power(jnp.maximum(1.5 * x, 0.0), 3.0)
    assert jnp.allclose(out2, ref2, atol=1e-4, rtol=1e-4)

    print("KERNEL_OK")
</pallas_src>

<mosaic_0001>
module attributes {stable_mosaic.version = 11 : i64} {
  func.func @kernel(%arg0: i32, %arg1: memref<4x512xf32, #tpu.memory_space<vmem>>, %arg2: memref<4x512xf32, #tpu.memory_space<vmem>>) attributes {dimension_semantics = [#tpu.dimension_semantics<parallel>], iteration_bounds = array<i64: 1>, scalar_prefetch = 0 : i64, scratch_operands = 0 : i64, tpu.core_type = #tpu.core_type<tc>, window_params = [{transform_indices = @transform_0, window_bounds = array<i64: 4, 512>}, {transform_indices = @transform_1, window_bounds = array<i64: 4, 512>}]} {
    %c0 = arith.constant 0 : index
    %c0_0 = arith.constant 0 : index
    %0 = vector.load %arg1[%c0, %c0_0] : memref<4x512xf32, #tpu.memory_space<vmem>>, vector<4x512xf32>
    %cst = arith.constant 0.000000e+00 : f32
    %1 = vector.broadcast %cst : f32 to vector<4x512xf32>
    %2 = arith.maximumf %0, %1 : vector<4x512xf32>
    %3 = arith.mulf %2, %2 : vector<4x512xf32>
    %c0_1 = arith.constant 0 : index
    %c0_2 = arith.constant 0 : index
    %4 = vector.load %arg2[%c0_1, %c0_2] : memref<4x512xf32, #tpu.memory_space<vmem>>, vector<4x512xf32>
    tpu.vector_store %arg2[%c0_1, %c0_2], %3 {strides = array<i32>} : memref<4x512xf32, #tpu.memory_space<vmem>>, vector<4x512xf32>,
    return
  }
  func.func @transform_0(%arg0: i32) -> (i32, i32) {
    %c0_i32 = arith.constant 0 : i32
    %c0_i32_0 = arith.constant 0 : i32
    return %arg0, %c0_i32 : i32, i32
  }
  func.func @transform_1(%arg0: i32) -> (i32, i32) {
    %c0_i32 = arith.constant 0 : i32
    %c0_i32_0 = arith.constant 0 : i32
    return %arg0, %c0_i32 : i32, i32
  }
}

</mosaic_0001>

<llo_original>
// kernel: tpu_custom_call.1
$region0: #{tpu_custom_call.1}
  #allocation0 [shape = 'u32[]', space=smem, size = 0x4, offset = 0x4, fixed_abs, tag = 'smem constant byte address 0x4 - core index']
  #allocation1 [shape = 'u32[144,128]{1,0:T(1,128)}', space=vmem, size = 0x12000, scoped, tag = 'internal scratch']
  %s0 = inlined_call_operand.hbm [shape: f32[4,512], index: 0, kind: input, shape index: {}]
  %s1 = inlined_call_operand.hbm [shape: f32[4,512], index: 1, kind: output, shape index: {}]
  %s2 = sld [smem:[#allocation0]]
  $region18: #{tpu_custom_call.1} parent=0
    _
  %s4 = ssub.s32 1, %s2
  %s5 = scalar_select 0, %s4, %s2
  $region1: #{tpu_custom_call.1} parent=0
    #allocation2 [shape = 'u8[8192]{0}', space=vmem, size = 0x2000, scoped, tag = 'input window, operand 0, single buffered']
    #allocation3 [shape = 's32[1]{0}', space=sflag, size = 0x4, scoped, tag = 'scoped memory for tpu_custom_call.1']
    #allocation4 [shape = 's32[1]{0}', space=sflag, size = 0x4, scoped, tag = 'scoped memory for tpu_custom_call.1']
    #allocation5 [shape = 'u8[8192]{0}', space=vmem, size = 0x2000, scoped, tag = 'output window, operand 0, single buffered']
    %6 = vsyncpa [#allocation3], 0
    %7 = vsyncpa [#allocation4], 0
    // Predicated region
    $region2: #{tpu_custom_call.1} parent=1 // pred_check
      _
    $region3: #{tpu_custom_call.1} parent=1 // pred_check_branch
      %9 = sbr.rel (0) target = $region5
    $region4: #{tpu_custom_call.1} parent=1 // pred_region
      %s11 = ssub.s32 256, 256
      %12 = vsyncadd [#allocation3], %s11
      %s14 = sshll.u32 [#allocation2], 4
      %s15 = int_to_ptr.vmem [resolvable:$true] %s14
      %17 = dma.hbm_to_vmem [thread:$0]  %s0, 256, %s15, [#allocation3]
    $region5: #{tpu_custom_call.1} parent=1 // pred_fallthru
      _
    // Predicated region
    $region6: #{tpu_custom_call.1} parent=1 // pred_check
      _
    $region7: #{tpu_custom_call.1} parent=1 // pred_check_branch
      %19 = sbr.rel (0) target = $region9
    $region8: #{tpu_custom_call.1} parent=1 // pred_region
      %20 = dma.done [#allocation3], 256
    $region9: #{tpu_custom_call.1} parent=1 // pred_fallthru
      _
    %v21 = vld [vmem:[#allocation2] sm:$0xff]
    %v22 = vld [vmem:[#allocation2 + $0x8] sm:$0xff]
    %v23 = vmax.f32 %v21, 0.0
    %v24 = vmax.f32 %v22, 0.0
    %v25 = vmul.f32 %v23, %v23
    %v26 = vmul.f32 %v24, %v24
    %27 = vst [vmem:[#allocation5] sm:$0xff] %v25
    %28 = vst [vmem:[#allocation5 + $0x8] sm:$0xff] %v26
    // Predicated region
    $region10: #{tpu_custom_call.1} parent=1 // pred_check
      _
    $region11: #{tpu_custom_call.1} parent=1 // pred_check_branch
      %30 = sbr.rel (0) target = $region13
    $region12: #{tpu_custom_call.1} parent=1 // pred_region
      %s32 = ssub.s32 256, 256
      %33 = vsyncadd [#allocation4], %s32
      %s35 = sshll.u32 [#allocation5], 4
      %s36 = int_to_ptr.vmem [resolvable:$true] %s35
      %38 = dma.vmem_to_hbm [thread:$0]  %s36, 256, %s1, [#allocation4]
    $region13: #{tpu_custom_call.1} parent=1 // pred_fallthru
      _
    // Predicated region
    $region14: #{tpu_custom_call.1} parent=1 // pred_check
      _
    $region15: #{tpu_custom_call.1} parent=1 // pred_check_branch
      %40 = sbr.rel (0) target = $region17
    $region16: #{tpu_custom_call.1} parent=1 // pred_region
      %41 = dma.done [#allocation4], 256
    $region17: #{tpu_custom_call.1} parent=1 // pred_fallthru
      _
    %42 = vsyncpa [#allocation3], 1
    %43 = vsyncpa [#allocation4], 1

</llo_original>
